<compile_context>
chip_gen: v5e
topology: v5e:2x2
jax: 0.10.0
libtpu: 0.0.40
codegen_flags: <defaults>
</compile_context>

<pallas_src>
import math

import jax
import jax.numpy as jnp
from jax.experimental import pallas as pl
from jax.experimental.pallas import tpu as pltpu

# Safe on v5e/v6e (128 MiB physical) and under v7x's 64 MiB ceiling.
_VMEM_LIMIT = 48 * 1024 * 1024


def _pick_t_tile(t_out):
    """Largest lane-dense (multiple-of-128) time tile dividing t_out, else full T."""
    for cand in (2048, 1024, 512, 256, 128):
        if t_out >= cand and t_out % cand == 0:
            return cand
    # TODO(synk): t_out not a multiple of 128 falls back to one full-T block;
    # fine for short sequences, pad T externally for very long audio.
    return t_out


# ----------------------------------------------------------------------------
# Fused Conv1d + BN(eval) + PReLU kernel (channels-first, taps sliced in-kernel)
# ----------------------------------------------------------------------------
def _make_conv_kernel(k_taps, dilation, t_tile, n_t, apply_act):
    """x_ref: (1, Cin, T_pad)  full padded time axis (resident across T tiles)
       w_ref: (K, Cout, Cin)   scale/shift/alpha: (Cout, 1)
       o_ref: (1, Cout, t_tile)"""

    def kernel(x_ref, w_ref, scale_ref, shift_ref, alpha_ref, o_ref):
        if n_t == 1:
            t0 = 0                                  # fully static slices
        else:
            t0 = pl.program_id(1) * t_tile
            if t_tile % 128 == 0:
                t0 = pl.multiple_of(t0, 128)
        c_out = o_ref.shape[1]
        acc = jnp.zeros((c_out, t_tile), jnp.float32)
        for k in range(k_taps):                     # static unroll over taps
            xk = x_ref[0, :, pl.ds(t0 + k * dilation, t_tile)]
            acc = acc + jnp.dot(w_ref[k], xk, preferred_element_type=jnp.float32)
        y = acc * scale_ref[...] + shift_ref[...]   # folded BN affine (+ bias)
        if apply_act:
            y = jnp.where(y >= 0.0, y, alpha_ref[...] * y)   # PReLU
        o_ref[0] = y.astype(o_ref.dtype)

    return kernel


def _conv_call(x_pad, w_koc, scale, shift, alpha, *, t_out, dilation,
               apply_act, out_dtype):
    b, c_in, t_pad = x_pad.shape
    k_taps, c_out, c_in_w = w_koc.shape
    assert c_in_w == c_in
    t_tile = _pick_t_tile(t_out)
    n_t = t_out // t_tile

    scale2 = scale.reshape(c_out, 1).astype(jnp.float32)
    shift2 = shift.reshape(c_out, 1).astype(jnp.float32)
    alpha2 = alpha.reshape(c_out, 1).astype(jnp.float32)

    itemsize = jnp.dtype(out_dtype).itemsize
    cost = pl.CostEstimate(
        flops=int(2 * b * t_out * c_out * k_taps * c_in),
        transcendentals=0,
        bytes_accessed=int(x_pad.size * x_pad.dtype.itemsize
                           + w_koc.size * w_koc.dtype.itemsize
                           + b * c_out * t_out * itemsize),
    )

    return pl.pallas_call(
        _make_conv_kernel(k_taps, dilation, t_tile, n_t, apply_act),
        out_shape=jax.ShapeDtypeStruct((b, c_out, t_out), out_dtype),
        grid=(b, n_t),
        in_specs=[
            pl.BlockSpec((1, c_in, t_pad), lambda i, j: (i, 0, 0)),
            pl.BlockSpec((k_taps, c_out, c_in), lambda i, j: (0, 0, 0)),
            pl.BlockSpec((c_out, 1), lambda i, j: (0, 0)),
            pl.BlockSpec((c_out, 1), lambda i, j: (0, 0)),
            pl.BlockSpec((c_out, 1), lambda i, j: (0, 0)),
        ],
        out_specs=pl.BlockSpec((1, c_out, t_tile), lambda i, j: (i, 0, j)),
        compiler_params=pltpu.CompilerParams(
            dimension_semantics=("parallel", "parallel"),
            vmem_limit_bytes=_VMEM_LIMIT),
        cost_estimate=cost,
    )(x_pad, w_koc, scale2, shift2, alpha2)


def conv1d_block(x_bct, p, *, stride=1, dilation=1, apply_act=True):
    """'same'-padded Conv1d (+ folded eval-BN + PReLU) on a (B, C, T) tensor."""
    w = p["w"]                                     # (K, Cout, Cin)
    k_taps = w.shape[0]
    b, c_in, t = x_bct.shape
    t_out = -(-t // stride)                        # ceil(T / stride)
    eff_k = (k_taps - 1) * dilation + 1
    total_pad = max((t_out - 1) * stride + eff_k - t, 0)
    lpad = total_pad // 2
    rpad = total_pad - lpad
    x_pad = jnp.pad(x_bct, ((0, 0), (0, 0), (lpad, rpad)))

    if stride == 1:
        # Taps sliced in-kernel from the single padded copy (no HBM duplication).
        return _conv_call(x_pad, w, p["scale"], p["shift"], p["alpha"],
                          t_out=t_out, dilation=dilation,
                          apply_act=apply_act, out_dtype=x_bct.dtype)

    # stride > 1 (re_sampler only): fold taps into the contraction dim so the
    # kernel does ONE (Cout, K*Cin) x (K*Cin, T_out) matmul.
    cols = [x_pad[:, :, off:off + (t_out - 1) * stride + 1:stride]
            for off in range(0, eff_k, dilation)]
    taps = jnp.concatenate(cols, axis=1)           # (B, K*Cin, T_out)
    c_out = w.shape[1]
    w_folded = w.transpose(1, 0, 2).reshape(1, c_out, k_taps * c_in)
    return _conv_call(taps, w_folded, p["scale"], p["shift"], p["alpha"],
                      t_out=t_out, dilation=1,
                      apply_act=apply_act, out_dtype=x_bct.dtype)


# ----------------------------------------------------------------------------
# Fused WaveNet residual block (dilated conv + BN + gate + res/skip + adds)
# ----------------------------------------------------------------------------
def _make_wn_block_kernel(k_taps, dilation, lpad, t_tile, n_t, gate_dim):

    def kernel(hpad_ref, wdil_ref, sdil_ref, bdil_ref,
               wres_ref, bres_ref, wskip_ref, bskip_ref,
               skipin_ref, hout_ref, skipout_ref):
        if n_t == 1:
            t0 = 0
        else:
            t0 = pl.program_id(1) * t_tile
            if t_tile % 128 == 0:
                t0 = pl.multiple_of(t0, 128)

        two_g = wdil_ref.shape[1]
        acc = jnp.zeros((two_g, t_tile), jnp.float32)
        for k in range(k_taps):                     # dilated conv, taps in VMEM
            xk = hpad_ref[0, :, pl.ds(t0 + k * dilation, t_tile)]
            acc = acc + jnp.dot(wdil_ref[k], xk, preferred_element_type=jnp.float32)
        ab = acc * sdil_ref[...] + bdil_ref[...]    # folded BN

        # Gate: split along the sublane (channel) axis -> clean sublane tiles;
        # tanh/sigmoid go to the otherwise idle EUP.
        z = jnp.tanh(ab[:gate_dim, :]) * jax.nn.sigmoid(ab[gate_dim:, :])

        # Residual branch: 1x1 conv + residual add, fused.
        h_c = hpad_ref[0, :, pl.ds(t0 + lpad, t_tile)].astype(jnp.float32)
        res = jnp.dot(wres_ref[...], z, preferred_element_type=jnp.float32)
        hout_ref[0] = (h_c + res + bres_ref[...]).astype(hout_ref.dtype)

        # Skip branch: 1x1 conv + running skip accumulation, fused.
        skp = jnp.dot(wskip_ref[...], z, preferred_element_type=jnp.float32)
        skipout_ref[0] = (skipin_ref[0].astype(jnp.float32)
                          + skp + bskip_ref[...]).astype(skipout_ref.dtype)

    return kernel


def wavenet_block(h_bct, skips_bct, blk, kernel_size):
    b, c_res, t = h_bct.shape
    d = blk["dilation"]
    eff_k = (kernel_size - 1) * d + 1
    total_pad = eff_k - 1
    lpad = total_pad // 2
    rpad = total_pad - lpad
    h_pad = jnp.pad(h_bct, ((0, 0), (0, 0), (lpad, rpad)))
    t_pad = t + total_pad

    w_dil = blk["dil"]["w"]                         # (K, 2G, Cres)
    two_g = w_dil.shape[1]
    g = two_g // 2
    s_dil = blk["dil"]["scale"].reshape(two_g, 1).astype(jnp.float32)
    b_dil = blk["dil"]["shift"].reshape(two_g, 1).astype(jnp.float32)
    w_res = blk["res"]["w"][0]                      # (Cres, G)
    b_res = blk["res"]["shift"].reshape(c_res, 1).astype(jnp.float32)
    w_skip = blk["skip"]["w"][0]                    # (Cskip, G)
    c_skip = w_skip.shape[0]
    b_skip = blk["skip"]["shift"].reshape(c_skip, 1).astype(jnp.float32)

    t_tile = _pick_t_tile(t)
    n_t = t // t_tile

    itemsize = jnp.dtype(h_bct.dtype).itemsize
    flops = 2 * b * t * (two_g * kernel_size * c_res + c_res * g + c_skip * g)
    bytes_accessed = ((h_pad.size + skips_bct.size) * itemsize
                      + (w_dil.size + w_res.size + w_skip.size) * 4
                      + b * t * (c_res + c_skip) * itemsize)
    cost = pl.CostEstimate(flops=int(flops),
                           transcendentals=int(2 * b * t * g),
                           bytes_accessed=int(bytes_accessed))

    h_new, skips_new = pl.pallas_call(
        _make_wn_block_kernel(kernel_size, d, lpad, t_tile, n_t, g),
        out_shape=(jax.ShapeDtypeStruct((b, c_res, t), h_bct.dtype),
                   jax.ShapeDtypeStruct((b, c_skip, t), skips_bct.dtype)),
        grid=(b, n_t),
        in_specs=[
            pl.BlockSpec((1, c_res, t_pad), lambda i, j: (i, 0, 0)),
            pl.BlockSpec((kernel_size, two_g, c_res), lambda i, j: (0, 0, 0)),
            pl.BlockSpec((two_g, 1), lambda i, j: (0, 0)),
            pl.BlockSpec((two_g, 1), lambda i, j: (0, 0)),
            pl.BlockSpec((c_res, g), lambda i, j: (0, 0)),
            pl.BlockSpec((c_res, 1), lambda i, j: (0, 0)),
            pl.BlockSpec((c_skip, g), lambda i, j: (0, 0)),
            pl.BlockSpec((c_skip, 1), lambda i, j: (0, 0)),
            pl.BlockSpec((1, c_skip, t_tile), lambda i, j: (i, 0, j)),
        ],
        out_specs=(
            pl.BlockSpec((1, c_res, t_tile), lambda i, j: (i, 0, j)),
            pl.BlockSpec((1, c_skip, t_tile), lambda i, j: (i, 0, j)),
        ),
        compiler_params=pltpu.CompilerParams(
            dimension_semantics=("parallel", "parallel"),
            vmem_limit_bytes=_VMEM_LIMIT),
        cost_estimate=cost,
    )(h_pad, w_dil, s_dil, b_dil, w_res, b_res, w_skip, b_skip, skips_bct)
    return h_new, skips_new


# ----------------------------------------------------------------------------
# Deterministic parameter construction (eval-mode BN folded into scale/shift)
# ----------------------------------------------------------------------------
def _make_layer(key, c_in, c_out, k, *, with_bn, with_prelu, bn_eps=1e-5):
    k1, k2 = jax.random.split(key)
    w = jax.random.normal(k1, (k, c_out, c_in), jnp.float32) / math.sqrt(c_in * k)
    bias = 0.01 * jax.random.normal(k2, (c_out,), jnp.float32)
    if with_bn:
        gamma = jnp.ones((c_out,), jnp.float32)
        beta = jnp.zeros((c_out,), jnp.float32)
        mean = jnp.zeros((c_out,), jnp.float32)
        var = jnp.ones((c_out,), jnp.float32)
        scale = gamma / jnp.sqrt(var + bn_eps)      # eval-mode BN affine
        shift = beta + (bias - mean) * scale        # conv bias folded in
    else:
        scale = jnp.ones((c_out,), jnp.float32)
        shift = bias
    alpha = (0.25 * jnp.ones((c_out,), jnp.float32) if with_prelu
             else jnp.ones((c_out,), jnp.float32))
    return {"w": w, "scale": scale, "shift": shift, "alpha": alpha}


def make_encoder_params(key, *, input_dim, output_dim, residual_dim, gate_dim,
                        skip_dim, kernel_size, dilation_list, n_stages=1,
                        down_sample_factor=2, cond_dim=None):
    # TODO(synk): conditioning path (cond_dim / c_bct 1x1 conv added before the
    # gate) is not implemented; reference WaveNet body is not shown.
    assert cond_dim is None, "TODO(synk): cond path not implemented"
    keys = jax.random.split(key, 64)
    ki = iter(range(64))
    params = {"down_sample_factor": down_sample_factor,
              "kernel_size": kernel_size}

    # in_layer: Conv1d(input_dim, residual_dim, 5) + BN + PReLU
    params["in"] = _make_layer(keys[next(ki)], input_dim, residual_dim, 5,
                               with_bn=True, with_prelu=True)

    # re_sampler: Conv1d(res, res, receptive_width, stride=dsf) + BN + PReLU
    if down_sample_factor > 1:
        rw = (4 + down_sample_factor % 2) * down_sample_factor
        params["resample"] = _make_layer(keys[next(ki)], residual_dim,
                                         residual_dim, rw,
                                         with_bn=True, with_prelu=True)
    else:
        params["resample"] = None

    blocks = []
    for _ in range(n_stages):
        for d in dilation_list:
            blocks.append({
                "dilation": int(d),
                "dil": _make_layer(keys[next(ki)], residual_dim, 2 * gate_dim,
                                   kernel_size, with_bn=True, with_prelu=False),
                "res": _make_layer(keys[next(ki)], gate_dim, residual_dim, 1,
                                   with_bn=False, with_prelu=False),
                "skip": _make_layer(keys[next(ki)], gate_dim, skip_dim, 1,
                                    with_bn=False, with_prelu=False),
            })
    params["wn_blocks"] = blocks

    # out_layer: Conv1d(skip, out, k) + BN + PReLU, then Conv1d(out, out, 1)
    params["out1"] = _make_layer(keys[next(ki)], skip_dim, output_dim,
                                 kernel_size, with_bn=True, with_prelu=True)
    params["out2"] = _make_layer(keys[next(ki)], output_dim, output_dim, 1,
                                 with_bn=False, with_prelu=False)
    return params


# ----------------------------------------------------------------------------
# Encoder forward
# ----------------------------------------------------------------------------
def encoder_forward(params, x_bct, c_bct=None):
    """x_bct: (B, C_in, T) like the PyTorch module; returns (B, C_out, T_out)."""
    assert c_bct is None, "TODO(synk): conditioning path not implemented"

    # in_layer
    h = conv1d_block(x_bct, params["in"])

    # re_sampler
    if params["resample"] is not None:
        h = conv1d_block(h, params["resample"],
                         stride=params["down_sample_factor"])

    # WaveNet: each residual block is one fused pallas_call.
    b, _, t = h.shape
    c_skip = params["wn_blocks"][0]["skip"]["w"].shape[1]
    skips = jnp.zeros((b, c_skip, t), h.dtype)
    for blk in params["wn_blocks"]:
        h, skips = wavenet_block(h, skips, blk, params["kernel_size"])

    # out_layer
    y = conv1d_block(skips, params["out1"])
    y = conv1d_block(y, params["out2"], apply_act=False)
    return y


# ----------------------------------------------------------------------------
if __name__ == "__main__":
    key = jax.random.PRNGKey(0)
    kp, kx = jax.random.split(key)

    B, C_IN, T = 2, 4, 16
    cfg = dict(input_dim=C_IN, output_dim=6, residual_dim=8, gate_dim=8,
               skip_dim=8, kernel_size=3, dilation_list=[1, 2],
               n_stages=1, down_sample_factor=2, cond_dim=None)

    params = make_encoder_params(kp, **cfg)
    x = jax.random.normal(kx, (B, C_IN, T), jnp.float32)

    y = encoder_forward(params, x)
    y = jax.block_until_ready(y)

    expected_t = -(-T // cfg["down_sample_factor"])
    assert y.shape == (B, cfg["output_dim"], expected_t), y.shape
    assert bool(jnp.all(jnp.isfinite(y)))
    print("KERNEL_OK")
</pallas_src>

<mosaic_0001>
module attributes {stable_mosaic.version = 11 : i64} {
  func.func @kernel(%arg0: i32, %arg1: i32, %arg2: memref<1x4x20xf32, #tpu.memory_space<vmem>>, %arg3: memref<5x8x4xf32, #tpu.memory_space<vmem>>, %arg4: memref<8x1xf32, #tpu.memory_space<vmem>>, %arg5: memref<8x1xf32, #tpu.memory_space<vmem>>, %arg6: memref<8x1xf32, #tpu.memory_space<vmem>>, %arg7: memref<1x8x16xf32, #tpu.memory_space<vmem>>) attributes {dimension_semantics = [#tpu.dimension_semantics<parallel>, #tpu.dimension_semantics<parallel>], iteration_bounds = array<i64: 2, 1>, scalar_prefetch = 0 : i64, scratch_operands = 0 : i64, tpu.core_type = #tpu.core_type<tc>, window_params = [{transform_indices = @transform_0, window_bounds = array<i64: 1, 4, 20>}, {pipeline_mode = #tpu.pipeline_mode<synchronous>, transform_indices = @transform_1, window_bounds = array<i64: 5, 8, 4>}, {pipeline_mode = #tpu.pipeline_mode<synchronous>, transform_indices = @transform_2, window_bounds = array<i64: 8, 1>}, {pipeline_mode = #tpu.pipeline_mode<synchronous>, transform_indices = @transform_3, window_bounds = array<i64: 8, 1>}, {pipeline_mode = #tpu.pipeline_mode<synchronous>, transform_indices = @transform_4, window_bounds = array<i64: 8, 1>}, {transform_indices = @transform_5, window_bounds = array<i64: 1, 8, 16>}]} {
    %cst = arith.constant 0.000000e+00 : f32
    %0 = vector.broadcast %cst : f32 to vector<8x16xf32>
    %c0 = arith.constant 0 : index
    %c0_0 = arith.constant 0 : index
    %c0_1 = arith.constant 0 : index
    %1 = vector.load %arg2[%c0, %c0_0, %c0_1] : memref<1x4x20xf32, #tpu.memory_space<vmem>>, vector<1x4x16xf32>
    %2 = vector.shape_cast %1 : vector<1x4x16xf32> to vector<4x16xf32>
    %c0_2 = arith.constant 0 : index
    %c0_3 = arith.constant 0 : index
    %c0_4 = arith.constant 0 : index
    %3 = vector.load %arg3[%c0_2, %c0_3, %c0_4] : memref<5x8x4xf32, #tpu.memory_space<vmem>>, vector<1x8x4xf32>
    %4 = vector.shape_cast %3 : vector<1x8x4xf32> to vector<8x4xf32>
    %cst_5 = arith.constant dense<0.000000e+00> : vector<8x16xf32>
    %5 = tpu.matmul %4, %2, %cst_5 {dimension_numbers = #tpu.dot_dimension_numbers<[1], [0], [0], [1], [0, 0, 1, 1], [], []>} : vector<8x4xf32>, vector<4x16xf32>, vector<8x16xf32> -> vector<8x16xf32>
    %6 = arith.addf %0, %5 : vector<8x16xf32>
    %c0_6 = arith.constant 0 : index
    %c0_7 = arith.constant 0 : index
    %c1 = arith.constant 1 : index
    %7 = vector.load %arg2[%c0_6, %c0_7, %c1] : memref<1x4x20xf32, #tpu.memory_space<vmem>>, vector<1x4x16xf32>
    %8 = vector.shape_cast %7 : vector<1x4x16xf32> to vector<4x16xf32>
    %c1_8 = arith.constant 1 : index
    %c0_9 = arith.constant 0 : index
    %c0_10 = arith.constant 0 : index
    %9 = vector.load %arg3[%c1_8, %c0_9, %c0_10] : memref<5x8x4xf32, #tpu.memory_space<vmem>>, vector<1x8x4xf32>
    %10 = vector.shape_cast %9 : vector<1x8x4xf32> to vector<8x4xf32>
    %cst_11 = arith.constant dense<0.000000e+00> : vector<8x16xf32>
    %11 = tpu.matmul %10, %8, %cst_11 {dimension_numbers = #tpu.dot_dimension_numbers<[1], [0], [0], [1], [0, 0, 1, 1], [], []>} : vector<8x4xf32>, vector<4x16xf32>, vector<8x16xf32> -> vector<8x16xf32>
    %12 = arith.addf %6, %11 : vector<8x16xf32>
    %c0_12 = arith.constant 0 : index
    %c0_13 = arith.constant 0 : index
    %c2 = arith.constant 2 : index
    %13 = vector.load %arg2[%c0_12, %c0_13, %c2] : memref<1x4x20xf32, #tpu.memory_space<vmem>>, vector<1x4x16xf32>
    %14 = vector.shape_cast %13 : vector<1x4x16xf32> to vector<4x16xf32>
    %c2_14 = arith.constant 2 : index
    %c0_15 = arith.constant 0 : index
    %c0_16 = arith.constant 0 : index
    %15 = vector.load %arg3[%c2_14, %c0_15, %c0_16] : memref<5x8x4xf32, #tpu.memory_space<vmem>>, vector<1x8x4xf32>
    %16 = vector.shape_cast %15 : vector<1x8x4xf32> to vector<8x4xf32>
    %cst_17 = arith.constant dense<0.000000e+00> : vector<8x16xf32>
    %17 = tpu.matmul %16, %14, %cst_17 {dimension_numbers = #tpu.dot_dimension_numbers<[1], [0], [0], [1], [0, 0, 1, 1], [], []>} : vector<8x4xf32>, vector<4x16xf32>, vector<8x16xf32> -> vector<8x16xf32>
    %18 = arith.addf %12, %17 : vector<8x16xf32>
    %c0_18 = arith.constant 0 : index
    %c0_19 = arith.constant 0 : index
    %c3 = arith.constant 3 : index
    %19 = vector.load %arg2[%c0_18, %c0_19, %c3] : memref<1x4x20xf32, #tpu.memory_space<vmem>>, vector<1x4x16xf32>
    %20 = vector.shape_cast %19 : vector<1x4x16xf32> to vector<4x16xf32>
    %c3_20 = arith.constant 3 : index
    %c0_21 = arith.constant 0 : index
    %c0_22 = arith.constant 0 : index
    %21 = vector.load %arg3[%c3_20, %c0_21, %c0_22] : memref<5x8x4xf32, #tpu.memory_space<vmem>>, vector<1x8x4xf32>
    %22 = vector.shape_cast %21 : vector<1x8x4xf32> to vector<8x4xf32>
    %cst_23 = arith.constant dense<0.000000e+00> : vector<8x16xf32>
    %23 = tpu.matmul %22, %20, %cst_23 {dimension_numbers = #tpu.dot_dimension_numbers<[1], [0], [0], [1], [0, 0, 1, 1], [], []>} : vector<8x4xf32>, vector<4x16xf32>, vector<8x16xf32> -> vector<8x16xf32>
    %24 = arith.addf %18, %23 : vector<8x16xf32>
    %c0_24 = arith.constant 0 : index
    %c0_25 = arith.constant 0 : index
    %c4 = arith.constant 4 : index
    %25 = vector.load %arg2[%c0_24, %c0_25, %c4] : memref<1x4x20xf32, #tpu.memory_space<vmem>>, vector<1x4x16xf32>
    %26 = vector.shape_cast %25 : vector<1x4x16xf32> to vector<4x16xf32>
    %c4_26 = arith.constant 4 : index
    %c0_27 = arith.constant 0 : index
    %c0_28 = arith.constant 0 : index
    %27 = vector.load %arg3[%c4_26, %c0_27, %c0_28] : memref<5x8x4xf32, #tpu.memory_space<vmem>>, vector<1x8x4xf32>
    %28 = vector.shape_cast %27 : vector<1x8x4xf32> to vector<8x4xf32>
    %cst_29 = arith.constant dense<0.000000e+00> : vector<8x16xf32>
    %29 = tpu.matmul %28, %26, %cst_29 {dimension_numbers = #tpu.dot_dimension_numbers<[1], [0], [0], [1], [0, 0, 1, 1], [], []>} : vector<8x4xf32>, vector<4x16xf32>, vector<8x16xf32> -> vector<8x16xf32>
    %30 = arith.addf %24, %29 : vector<8x16xf32>
    %c0_30 = arith.constant 0 : index
    %c0_31 = arith.constant 0 : index
    %31 = vector.load %arg4[%c0_30, %c0_31] : memref<8x1xf32, #tpu.memory_space<vmem>>, vector<8x1xf32>
    %32 = vector.broadcast %31 : vector<8x1xf32> to vector<8x16xf32>
    %33 = arith.mulf %30, %32 : vector<8x16xf32>
    %c0_32 = arith.constant 0 : index
    %c0_33 = arith.constant 0 : index
    %34 = vector.load %arg5[%c0_32, %c0_33] : memref<8x1xf32, #tpu.memory_space<vmem>>, vector<8x1xf32>
    %35 = vector.broadcast %34 : vector<8x1xf32> to vector<8x16xf32>
    %36 = arith.addf %33, %35 : vector<8x16xf32>
    %cst_34 = arith.constant 0.000000e+00 : f32
    %37 = vector.broadcast %cst_34 : f32 to vector<8x16xf32>
    %38 = arith.cmpf oge, %36, %37 : vector<8x16xf32>
    %c0_35 = arith.constant 0 : index
    %c0_36 = arith.constant 0 : index
    %39 = vector.load %arg6[%c0_35, %c0_36] : memref<8x1xf32, #tpu.memory_space<vmem>>, vector<8x1xf32>
    %40 = vector.broadcast %39 : vector<8x1xf32> to vector<8x16xf32>
    %41 = arith.mulf %40, %36 : vector<8x16xf32>
    %42 = arith.select %38, %36, %41 : vector<8x16xi1>, vector<8x16xf32>
    %c0_37 = arith.constant 0 : index
    %c0_38 = arith.constant 0 : index
    %c0_39 = arith.constant 0 : index
    %43 = vector.load %arg7[%c0_37, %c0_38, %c0_39] : memref<1x8x16xf32, #tpu.memory_space<vmem>>, vector<1x8x16xf32>
    %44 = vector.shape_cast %43 : vector<1x8x16xf32> to vector<8x16xf32>
    %45 = vector.shape_cast %42 : vector<8x16xf32> to vector<1x8x16xf32>
    tpu.vector_store %arg7[%c0_37, %c0_38, %c0_39], %45 {strides = array<i32>} : memref<1x8x16xf32, #tpu.memory_space<vmem>>, vector<1x8x16xf32>,
    return
  }
  func.func @transform_0(%arg0: i32, %arg1: i32) -> (i32, i32, i32) {
    %c0_i32 = arith.constant 0 : i32
    %c0_i32_0 = arith.constant 0 : i32
    %c0_i32_1 = arith.constant 0 : i32
    return %arg0, %c0_i32, %c0_i32_0 : i32, i32, i32
  }
  func.func @transform_1(%arg0: i32, %arg1: i32) -> (i32, i32, i32) {
    %c0_i32 = arith.constant 0 : i32
    %c0_i32_0 = arith.constant 0 : i32
    %c0_i32_1 = arith.constant 0 : i32
    %c0_i32_2 = arith.constant 0 : i32
    return %c0_i32, %c0_i32_0, %c0_i32_1 : i32, i32, i32
  }
  func.func @transform_2(%arg0: i32, %arg1: i32) -> (i32, i32) {
    %c0_i32 = arith.constant 0 : i32
    %c0_i32_0 = arith.constant 0 : i32
    %c0_i32_1 = arith.constant 0 : i32
    return %c0_i32, %c0_i32_0 : i32, i32
  }
  func.func @transform_3(%arg0: i32, %arg1: i32) -> (i32, i32) {
    %c0_i32 = arith.constant 0 : i32
    %c0_i32_0 = arith.constant 0 : i32
    %c0_i32_1 = arith.constant 0 : i32
    return %c0_i32, %c0_i32_0 : i32, i32
  }
  func.func @transform_4(%arg0: i32, %arg1: i32) -> (i32, i32) {
    %c0_i32 = arith.constant 0 : i32
    %c0_i32_0 = arith.constant 0 : i32
    %c0_i32_1 = arith.constant 0 : i32
    return %c0_i32, %c0_i32_0 : i32, i32
  }
  func.func @transform_5(%arg0: i32, %arg1: i32) -> (i32, i32, i32) {
    %c0_i32 = arith.constant 0 : i32
    %c0_i32_0 = arith.constant 0 : i32
    return %arg0, %c0_i32, %arg1 : i32, i32, i32
  }
}

</mosaic_0001>

<llo_original>
// kernel: tpu_custom_call.1
$region0: #{tpu_custom_call.1}
  #allocation0 [shape = 'u32[]', space=smem, size = 0x4, offset = 0x4, fixed_abs, tag = 'smem constant byte address 0x4 - core index']
  #allocation1 [shape = 'u32[72,128]{1,0:T(1,128)}', space=vmem, size = 0x9000, scoped, tag = 'internal scratch']
  %s0 = inlined_call_operand.vmem [shape: f32[2,4,20], index: 0, kind: input, shape index: {}]
  %s1 = inlined_call_operand.vmem [shape: f32[5,8,4], index: 1, kind: input, shape index: {}]
  %s2 = inlined_call_operand.vmem [shape: f32[8,1], index: 2, kind: input, shape index: {}]
  %s3 = inlined_call_operand.vmem [shape: f32[8,1], index: 3, kind: input, shape index: {}]
  %s4 = inlined_call_operand.vmem [shape: f32[8,1], index: 4, kind: input, shape index: {}]
  %s5 = inlined_call_operand.hbm [shape: f32[2,8,16], index: 5, kind: output, shape index: {}]
  %s6 = sld [smem:[#allocation0]]
  $region53: #{tpu_custom_call.1} parent=0
    _
  %s8 = ssub.s32 1, %s6
  %s9 = scalar_select 0, %s8, %s6
  $region1: #{tpu_custom_call.1} parent=0
    #allocation2 [shape = 'u8[8192]{0}', space=vmem, size = 0x2000, scoped, tag = 'output window, operand 0']
    #allocation3 [shape = 's32[2]{0}', space=sflag, size = 0x8, scoped, tag = 'scoped memory for tpu_custom_call.1']
    %10 = vsyncpa [#allocation3], 0
    %s11 = scalar_lea.sflag [#allocation3], 1
    %12 = vsyncpa %s11, 0
    loop: start=0, step=1, limit=4
    $region2: #{tpu_custom_call.1} parent=1 // loop_pre_header
      _
    $region3: #{tpu_custom_call.1} parent=1 // loop_header
      %s14 = sphi 0, %s18
      %p15 = scmp.ge.s32.totalorder %s14, 4
      %s21 = sphi 0, %s33
      %s22 = sphi 0, %s29
      %s23 = sphi 0, %s21
      %s24 = sphi 0, %s22
      %s25 = sphi 0, %s23
      %s26 = sphi 0, %s24
      %s36 = sphi 0, %s38
      %s39 = sphi 0, %s36
      %s40 = sphi 0, %s39
      %s56 = sphi 0, %s40
      %s60 = sphi 0, %s60
      %s62 = sphi 0, %s60
      %s63 = sphi 0, %s62
      %s77 = sphi 0, %s63
      %s81 = sphi 0, %s81
      %s83 = sphi 0, %s81
      %s84 = sphi 0, %s83
      %s98 = sphi 0, %s84
      %s102 = sphi 0, %s102
      %s104 = sphi 0, %s102
      %s105 = sphi 0, %s104
      %s119 = sphi 0, %s105
      %s123 = sphi 0, %s123
      %s125 = sphi 0, %s123
      %s126 = sphi 0, %s125
      %s140 = sphi 0, %s126
      %s148 = sphi 0, %s150
      %s151 = sphi 0, %s148
      %s152 = sphi 0, %s151
      %s168 = sphi 0, %s152
    $region4: #{tpu_custom_call.1} parent=1 // loop_header_branch
      %17 = sbr.rel (%p15) target = $region8
    $region5: #{tpu_custom_call.1} parent=1 // loop_body
      %s19 = ssub.s32 %s14, 1
      %s20 = ssub.s32 %s14, 2
      %s27 = sadd.s32 1, %s22
      %p28 = scmp.ge.s32.totalorder %s27, 1
      %s29 = scalar_select %p28, 0, %s27
      %s30 = sadd.s32 1, %s21
      %s31 = scalar_select %p28, %s30, %s21
      %p32 = scmp.ge.s32.totalorder %s31, 2
      %s33 = scalar_select %p32, 0, %s31
      %s34 = ssub.s32 %s21, %s33
      %p35 = scmp.eq.s32.totalorder %s34, 0
      %s37 = sadd.s32 %s36, 1
      %s38 = scalar_select %p35, %s36, %s37
      %p41 = pneg %p35
      %p42 = scmp.eq.s32.totalorder %s14, 1
      %p43 = por %p41, %p42
      %p44 = scmp.ne.s32.totalorder %s36, %s39
      %p45 = scmp.eq.s32.totalorder %s14, 0
      %p46 = por %p44, %p45
      %p47 = scmp.ne.s32.totalorder %s36, %s39
      %p48 = scmp.eq.s32.totalorder %s19, 1
      %p49 = por %p47, %p48
      %p50 = scmp.ne.s32.totalorder %s39, %s40
      %p51 = scmp.eq.s32.totalorder %s19, 0
      %p52 = por %p50, %p51
      %p53 = scmp.ne.s32.totalorder %s39, %s40
      %p54 = scmp.eq.s32.totalorder %s20, 1
      %p55 = por %p53, %p54
      %p57 = scmp.ne.s32.totalorder %s40, %s56
      %p58 = scmp.eq.s32.totalorder %s20, 0
      %p59 = por %p57, %p58
      %s61 = sadd.s32 %s60, 1
      %p64 = scmp.eq.s32.totalorder %s14, 1
      %p65 = scmp.ne.s32.totalorder %s60, %s62
      %p66 = scmp.eq.s32.totalorder %s14, 0
      %p67 = por %p65, %p66
      %p68 = scmp.ne.s32.totalorder %s60, %s62
      %p69 = scmp.eq.s32.totalorder %s19, 1
      %p70 = por %p68, %p69
      %p71 = scmp.ne.s32.totalorder %s62, %s63
      %p72 = scmp.eq.s32.totalorder %s19, 0
      %p73 = por %p71, %p72
      %p74 = scmp.ne.s32.totalorder %s62, %s63
      %p75 = scmp.eq.s32.totalorder %s20, 1
      %p76 = por %p74, %p75
      %p78 = scmp.ne.s32.totalorder %s63, %s77
      %p79 = scmp.eq.s32.totalorder %s20, 0
      %p80 = por %p78, %p79
      %s82 = sadd.s32 %s81, 1
      %p85 = scmp.eq.s32.totalorder %s14, 1
      %p86 = scmp.ne.s32.totalorder %s81, %s83
      %p87 = scmp.eq.s32.totalorder %s14, 0
      %p88 = por %p86, %p87
      %p89 = scmp.ne.s32.totalorder %s81, %s83
      %p90 = scmp.eq.s32.totalorder %s19, 1
      %p91 = por %p89, %p90
      %p92 = scmp.ne.s32.totalorder %s83, %s84
      %p93 = scmp.eq.s32.totalorder %s19, 0
      %p94 = por %p92, %p93
      %p95 = scmp.ne.s32.totalorder %s83, %s84
      %p96 = scmp.eq.s32.totalorder %s20, 1
      %p97 = por %p95, %p96
      %p99 = scmp.ne.s32.totalorder %s84, %s98
      %p100 = scmp.eq.s32.totalorder %s20, 0
      %p101 = por %p99, %p100
      %s103 = sadd.s32 %s102, 1
      %p106 = scmp.eq.s32.totalorder %s14, 1
      %p107 = scmp.ne.s32.totalorder %s102, %s104
      %p108 = scmp.eq.s32.totalorder %s14, 0
      %p109 = por %p107, %p108
      %p110 = scmp.ne.s32.totalorder %s102, %s104
      %p111 = scmp.eq.s32.totalorder %s19, 1
      %p112 = por %p110, %p111
      %p113 = scmp.ne.s32.totalorder %s104, %s105
      %p114 = scmp.eq.s32.totalorder %s19, 0
      %p115 = por %p113, %p114
      %p116 = scmp.ne.s32.totalorder %s104, %s105
      %p117 = scmp.eq.s32.totalorder %s20, 1
      %p118 = por %p116, %p117
      %p120 = scmp.ne.s32.totalorder %s105, %s119
      %p121 = scmp.eq.s32.totalorder %s20, 0
      %p122 = por %p120, %p121
      %s124 = sadd.s32 %s123, 1
      %p127 = scmp.eq.s32.totalorder %s14, 1
      %p128 = scmp.ne.s32.totalorder %s123, %s125
      %p129 = scmp.eq.s32.totalorder %s14, 0
      %p130 = por %p128, %p129
      %p131 = scmp.ne.s32.totalorder %s123, %s125
      %p132 = scmp.eq.s32.totalorder %s19, 1
      %p133 = por %p131, %p132
      %p134 = scmp.ne.s32.totalorder %s125, %s126
      %p135 = scmp.eq.s32.totalorder %s19, 0
      %p136 = por %p134, %p135
      %p137 = scmp.ne.s32.totalorder %s125, %s126
      %p138 = scmp.eq.s32.totalorder %s20, 1
      %p139 = por %p137, %p138
      %p141 = scmp.ne.s32.totalorder %s126, %s140
      %p142 = scmp.eq.s32.totalorder %s20, 0
      %p143 = por %p141, %p142
      %s144 = ssub.s32 %s21, %s33
      %s145 = ssub.s32 %s22, %s29
      %s146 = sor.u32 %s144, %s145
      %p147 = scmp.eq.s32.totalorder %s146, 0
      %s149 = sadd.s32 %s148, 1
      %s150 = scalar_select %p147, %s148, %s149
      %p153 = pneg %p147
      %p154 = scmp.eq.s32.totalorder %s14, 1
      %p155 = por %p153, %p154
      %p156 = scmp.ne.s32.totalorder %s148, %s151
      %p157 = scmp.eq.s32.totalorder %s14, 0
      %p158 = por %p156, %p157
      %p159 = scmp.ne.s32.totalorder %s148, %s151
      %p160 = scmp.eq.s32.totalorder %s19, 1
      %p161 = por %p159, %p160
      %p162 = scmp.ne.s32.totalorder %s151, %s152
      %p163 = scmp.eq.s32.totalorder %s19, 0
      %p164 = por %p162, %p163
      %p165 = scmp.ne.s32.totalorder %s151, %s152
      %p166 = scmp.eq.s32.totalorder %s20, 1
      %p167 = por %p165, %p166
      %p169 = scmp.ne.s32.totalorder %s152, %s168
      %p170 = scmp.eq.s32.totalorder %s20, 0
      %p171 = por %p169, %p170
      %p172 = scmp.le.s32.totalorder 1, %s14
      %p173 = scmp.lt.s32.totalorder %s14, 3
      %p174 = pnand %p172, %p173
      %p175 = pneg %p174
      // Predicated region
      $region9: #{tpu_custom_call.1} parent=5 // pred_check
        _
      $region10: #{tpu_custom_call.1} parent=5 // pred_check_branch
        %177 = sbr.rel (%p174) target = $region12
      $region11: #{tpu_custom_call.1} parent=5 // pred_region
        %s178 = ssub.s32 %s14, 1
        // Predicated region
        $region13: #{tpu_custom_call.1} parent=11 // pred_check
          %p179 = pneg %p73
        $region14: #{tpu_custom_call.1} parent=11 // pred_check_branch
          %181 = sbr.rel (%p179) target = $region16
        $region15: #{tpu_custom_call.1} parent=11 // pred_region
          _
        $region16: #{tpu_custom_call.1} parent=11 // pred_fallthru
          _
        // Predicated region
        $region17: #{tpu_custom_call.1} parent=11 // pred_check
          %p182 = pneg %p94
        $region18: #{tpu_custom_call.1} parent=11 // pred_check_branch
          %184 = sbr.rel (%p182) target = $region20
        $region19: #{tpu_custom_call.1} parent=11 // pred_region
          _
        $region20: #{tpu_custom_call.1} parent=11 // pred_fallthru
          _
        // Predicated region
        $region21: #{tpu_custom_call.1} parent=11 // pred_check
          %p185 = pneg %p115
        $region22: #{tpu_custom_call.1} parent=11 // pred_check_branch
          %187 = sbr.rel (%p185) target = $region24
        $region23: #{tpu_custom_call.1} parent=11 // pred_region
          _
        $region24: #{tpu_custom_call.1} parent=11 // pred_fallthru
          _
        // Predicated region
        $region25: #{tpu_custom_call.1} parent=11 // pred_check
          %p188 = pneg %p136
        $region26: #{tpu_custom_call.1} parent=11 // pred_check_branch
          %190 = sbr.rel (%p188) target = $region28
        $region27: #{tpu_custom_call.1} parent=11 // pred_region
          _
        $region28: #{tpu_custom_call.1} parent=11 // pred_fallthru
          _
      $region12: #{tpu_custom_call.1} parent=5 // pred_fallthru
        _
      %p191 = scmp.lt.s32.totalorder %s14, 2
      // Predicated region
      $region29: #{tpu_custom_call.1} parent=5 // pred_check
        %p192 = pneg %p191
      $region30: #{tpu_custom_call.1} parent=5 // pred_check_branch
        %194 = sbr.rel (%p192) target = $region32
      $region31: #{tpu_custom_call.1} parent=5 // pred_region
        // Predicated region
        $region33: #{tpu_custom_call.1} parent=31 // pred_check
          %p195 = pneg %p46
        $region34: #{tpu_custom_call.1} parent=31 // pred_check_branch
          %197 = sbr.rel (%p195) target = $region36
        $region35: #{tpu_custom_call.1} parent=31 // pred_region
          %p198 = scmp.lt.s32.totalorder %s21, 1
          %s199 = scalar_select %p198, %s21, 1
          %s200 = smul.addr %s199, 4
          %s201 = scalar_lea.vmem %s0, %s200
        $region36: #{tpu_custom_call.1} parent=31 // pred_fallthru
          _
      $region32: #{tpu_custom_call.1} parent=5 // pred_fallthru
        _
      %p202 = scmp.le.s32.totalorder 1, %s14
      %p203 = scmp.lt.s32.totalorder %s14, 3
      %p204 = pnand %p202, %p203
      %p205 = pneg %p204
      // Predicated region
      $region37: #{tpu_custom_call.1} parent=5 // pred_check
        _
      $region38: #{tpu_custom_call.1} parent=5 // pred_check_branch
        %207 = sbr.rel (%p204) target = $region40
      $region39: #{tpu_custom_call.1} parent=5 // pred_region
        %s208 = ssub.s32 %s14, 1
        %p209 = scmp.lt.s32.totalorder %s23, 1
        %s210 = scalar_select %p209, %s23, 1
        %s211 = smul.addr %s210, 4
        %s212 = scalar_lea.vmem %s0, %s211
        %p213 = pneg %p52
        %p214 = pneg %p49
        %p215 = pneg %p73
        %p216 = pneg %p70
        %p217 = pneg %p94
        %p218 = pneg %p91
        %p219 = pneg %p115
        %p220 = pneg %p112
        %p221 = pneg %p136
        %p222 = pneg %p133
        %p223 = pneg %p164
        %p224 = pneg %p161
        %s225 = sand.u32 %s151, 1
        %s226 = scalar_lea.sflag [#allocation3], %s225
        %s227 = sand.u32 %s151, 1
        %s228 = smul.addr %s227, 8
        %s229 = scalar_lea.vmem [#allocation2], %s228
        %p230 = scmp.lt.s32.totalorder %s23, 1
        %s231 = scalar_select %p230, %s23, 1
        %s232 = smul.addr %s231, 4
        %s233 = scalar_lea.vmem %s0, %s232
        %v234 = vld [vmem:[%s233] sm:$0xf]
        %v235 = vld [vmem:[%s1] sm:$0xff]
        %s236 = scalar_lea.vmem %s1, 8
        %v237 = vld [vmem:[%s236] sm:$0xff]
        %239 = vrot.lane.b32.xlu0 %v234, 127
        %v240 = vpop.permute.xlu0 %239
        %vm241 = vcmask 31744
        %v243 = vsel %vm241, %v237, 0
        %vm245 = vcmask 1043456
        %v246 = vsel %vm245, %v240, 0
        %248 = vmatpush.msra.mxu0 0.0
        %249 = vmatpush.msra.mxu0 0.0
        %250 = vmatpush.msra.mxu0 0.0
        %251 = vmatpush.msra.mxu0 0.0
        %252 = vmatpush.msra.mxu0 0.0
        %253 = vmatpush.msra.mxu0 0.0
        %254 = vmatpush.msra.mxu0 0.0
        %255 = vmatpush.msra.mxu0 0.0
        %256 = vmatpush.msra.mxu0 0.0
        %257 = vmatpush.msra.mxu0 0.0
        %258 = vmatpush.msra.mxu0 0.0
        %259 = vmatpush.msra.mxu0 0.0
        %260 = vmatpush.msra.mxu0 0.0
        %261 = vmatpush.msra.mxu0 0.0
        %262 = vmatpush.msra.mxu0 0.0
        %263 = vmatpush.msra.mxu0 %v246
        %264 = vmatmul.f32.gmra.mxu0 %v243
        %v265 = vpop.f32.mrf.mxu0
        %v266 = vadd.f32 0.0, %v265
        %267 = vdwg.mxu0
        %v269 = vsel %vm241, %v235, 0
        %v271 = vsel %vm245, %v234, 0
        %273 = vmatpush.msra.mxu0 0.0
        %274 = vmatpush.msra.mxu0 0.0
        %275 = vmatpush.msra.mxu0 0.0
        %276 = vmatpush.msra.mxu0 0.0
        %277 = vmatpush.msra.mxu0 0.0
        %278 = vmatpush.msra.mxu0 0.0
        %279 = vmatpush.msra.mxu0 0.0
        %280 = vmatpush.msra.mxu0 0.0
        %281 = vmatpush.msra.mxu0 0.0
        %282 = vmatpush.msra.mxu0 0.0
        %283 = vmatpush.msra.mxu0 0.0
        %284 = vmatpush.msra.mxu0 0.0
        %285 = vmatpush.msra.mxu0 0.0
        %286 = vmatpush.msra.mxu0 0.0
        %287 = vmatpush.msra.mxu0 0.0
        %288 = vmatpush.msra.mxu0 %v271
        %289 = vmatmul.f32.gmra.mxu0 %v269
        %v290 = vpop.f32.mrf.mxu0
        %v291 = vadd.f32 %v266, %v290
        %292 = vdwg.mxu0
        %s293 = scalar_lea.vmem %s1, 16
        %v294 = vld [vmem:[%s293] sm:$0xff]
        %295 = vrot.lane.b32.xlu0 %v234, 126
        %v296 = vpop.permute.xlu0 %295
        %v298 = vsel %vm241, %v294, 0
        %v300 = vsel %vm245, %v296, 0
        %302 = vmatpush.msra.mxu0 0.0
        %303 = vmatpush.msra.mxu0 0.0
        %304 = vmatpush.msra.mxu0 0.0
        %305 = vmatpush.msra.mxu0 0.0
        %306 = vmatpush.msra.mxu0 0.0
        %307 = vmatpush.msra.mxu0 0.0
        %308 = vmatpush.msra.mxu0 0.0
        %309 = vmatpush.msra.mxu0 0.0
        %310 = vmatpush.msra.mxu0 0.0
        %311 = vmatpush.msra.mxu0 0.0
        %312 = vmatpush.msra.mxu0 0.0
        %313 = vmatpush.msra.mxu0 0.0
        %314 = vmatpush.msra.mxu0 0.0
        %315 = vmatpush.msra.mxu0 0.0
        %316 = vmatpush.msra.mxu0 0.0
        %317 = vmatpush.msra.mxu0 %v300
        %318 = vmatmul.f32.gmra.mxu0 %v298
        %v319 = vpop.f32.mrf.mxu0
        %v320 = vadd.f32 0.0, %v319
        %321 = vdwg.mxu0
        %v322 = vadd.f32 %v291, %v320
        %s323 = scalar_lea.vmem %s1, 24
        %v324 = vld [vmem:[%s323] sm:$0xff]
        %325 = vrot.lane.b32.xlu0 %v234, 125
        %v326 = vpop.permute.xlu0 %325
        %v328 = vsel %vm241, %v324, 0
        %v330 = vsel %vm245, %v326, 0
        %332 = vmatpush.msra.mxu0 0.0
        %333 = vmatpush.msra.mxu0 0.0
        %334 = vmatpush.msra.mxu0 0.0
        %335 = vmatpush.msra.mxu0 0.0
        %336 = vmatpush.msra.mxu0 0.0
        %337 = vmatpush.msra.mxu0 0.0
        %338 = vmatpush.msra.mxu0 0.0
        %339 = vmatpush.msra.mxu0 0.0
        %340 = vmatpush.msra.mxu0 0.0
        %341 = vmatpush.msra.mxu0 0.0
        %342 = vmatpush.msra.mxu0 0.0
        %343 = vmatpush.msra.mxu0 0.0
        %344 = vmatpush.msra.mxu0 0.0
        %345 = vmatpush.msra.mxu0 0.0
        %346 = vmatpush.msra.mxu0 0.0
        %347 = vmatpush.msra.mxu0 %v330
        %348 = vmatmul.f32.gmra.mxu0 %v328
        %v349 = vpop.f32.mrf.mxu0
        %v350 = vadd.f32 0.0, %v349
        %351 = vdwg.mxu0
        %v352 = vadd.f32 %v322, %v350
        %s353 = scalar_lea.vmem %s1, 32
        %v354 = vld [vmem:[%s353] sm:$0xff]
        %355 = vrot.lane.b32.xlu0 %v234, 124
        %v356 = vpop.permute.xlu0 %355
        %v358 = vsel %vm241, %v354, 0
        %v360 = vsel %vm245, %v356, 0
        %362 = vmatpush.msra.mxu0 0.0
        %363 = vmatpush.msra.mxu0 0.0
        %364 = vmatpush.msra.mxu0 0.0
        %365 = vmatpush.msra.mxu0 0.0
        %366 = vmatpush.msra.mxu0 0.0
        %367 = vmatpush.msra.mxu0 0.0
        %368 = vmatpush.msra.mxu0 0.0
        %369 = vmatpush.msra.mxu0 0.0
        %370 = vmatpush.msra.mxu0 0.0
        %371 = vmatpush.msra.mxu0 0.0
        %372 = vmatpush.msra.mxu0 0.0
        %373 = vmatpush.msra.mxu0 0.0
        %374 = vmatpush.msra.mxu0 0.0
        %375 = vmatpush.msra.mxu0 0.0
        %376 = vmatpush.msra.mxu0 0.0
        %377 = vmatpush.msra.mxu0 %v360
        %378 = vmatmul.f32.gmra.mxu0 %v358
        %v379 = vpop.f32.mrf.mxu0
        %v380 = vadd.f32 0.0, %v379
        %381 = vdwg.mxu0
        %v382 = vadd.f32 %v352, %v380
        %v383 = vld [vmem:[%s2] sm:$0xff]
        %385 = vset.pattern.permute.xlu0 0
        %386 = vperm.xlu0 %385, %v383
        %v387 = vpop.permute.xlu0 %386
        %v389 = vmul.f32 %v382, %v387
        %v390 = vld [vmem:[%s3] sm:$0xff]
        %392 = vset.pattern.permute.xlu0 0
        %393 = vperm.xlu0 %392, %v390
        %v394 = vpop.permute.xlu0 %393
        %v396 = vadd.f32 %v389, %v394
        %vm397 = vcmp.ge.f32.partialorder %v396, 0.0
        %v398 = vld [vmem:[%s4] sm:$0xff]
        %400 = vset.pattern.permute.xlu0 0
        %401 = vperm.xlu0 %400, %v398
        %v402 = vpop.permute.xlu0 %401
        %v404 = vmul.f32 %v402, %v396
        %v405 = vsel %vm397, %v396, %v404
        %vm406 = vcmask 130048
        %407 = vst.msk [vmem:[%s229] sm:$0xff] %vm406, %v405
        %s408 = sand.u32 %s151, 1
        %s409 = scalar_lea.sflag [#allocation3], %s408
        %s410 = sand.u32 %s151, 1
        %s411 = smul.addr %s410, 8
        %s412 = scalar_lea.vmem [#allocation2], %s411
        // Predicated region
        $region41: #{tpu_custom_call.1} parent=39 // pred_check
          %p413 = pneg %p161
        $region42: #{tpu_custom_call.1} parent=39 // pred_check_branch
          %415 = sbr.rel (%p413) target = $region44
        $region43: #{tpu_custom_call.1} parent=39 // pred_region
          %417 = vsyncadd %s409, 0
          %s418 = sadd.s32 %s24, %s23
          %s419 = smul.addr %s418, 8
          %s420 = scalar_lea.hbm %s5, %s419
          %s422 = sshll.u32 %s412, 4
          %s423 = int_to_ptr.vmem [resolvable:$true] %s422
          %s424 = sshll.u32 %s420, 4
          %s425 = int_to_ptr.hbm [resolvable:$true] %s424
          %427 = dma.vmem_to_hbm [thread:$0]  %s423, 128, %s425, %s409
        $region44: #{tpu_custom_call.1} parent=39 // pred_fallthru
          _
      $region40: #{tpu_custom_call.1} parent=5 // pred_fallthru
        _
      %p428 = scmp.le.s32.totalorder 2, %s14
      // Predicated region
      $region45: #{tpu_custom_call.1} parent=5 // pred_check
        %p429 = pneg %p428
      $region46: #{tpu_custom_call.1} parent=5 // pred_check_branch
        %431 = sbr.rel (%p429) target = $region48
      $region47: #{tpu_custom_call.1} parent=5 // pred_region
        %s432 = ssub.s32 %s14, 2
        // Predicated region
        $region49: #{tpu_custom_call.1} parent=47 // pred_check
          %p433 = pneg %p167
        $region50: #{tpu_custom_call.1} parent=47 // pred_check_branch
          %435 = sbr.rel (%p433) target = $region52
        $region51: #{tpu_custom_call.1} parent=47 // pred_region
          %s436 = sand.u32 %s152, 1
          %s437 = scalar_lea.sflag [#allocation3], %s436
          %s438 = sand.u32 %s152, 1
          %s439 = smul.addr %s438, 8
          %s440 = scalar_lea.vmem [#allocation2], %s439
          %442 = dma.done %s437, 128
        $region52: #{tpu_custom_call.1} parent=47 // pred_fallthru
          _
      $region48: #{tpu_custom_call.1} parent=5 // pred_fallthru
        _
    $region6: #{tpu_custom_call.1} parent=1 // loop_footer
      %s18 = sadd.s32 1, %s14
    $region7: #{tpu_custom_call.1} parent=1 // loop_footer_branch
      %13 = sbr.rel target = $region3
    $region8: #{tpu_custom_call.1} parent=1 // loop_exit
      _
    %443 = vsyncpa [#allocation3], 1
    %s444 = scalar_lea.sflag [#allocation3], 1
    %445 = vsyncpa %s444, 1

</llo_original>
